<compile_context>
chip_gen: v7x
topology: tpu7x:2x2x1
jax: 0.10.0
libtpu: 0.0.40
codegen_flags: <defaults>
</compile_context>

<pallas_src>
import functools

import jax
import jax.numpy as jnp
from jax.experimental import pallas as pl
from jax.experimental.pallas import tpu as pltpu


def _round_up(x: int, m: int) -> int:
    return ((x + m - 1) // m) * m


def _vmem_capacity_bytes() -> int:
    try:
        return int(pltpu.get_tpu_info().vmem_capacity_bytes)
    except Exception:
        # Conservative fallback: v7x per-TensorCore VMEM (safe on every gen).
        return 64 * 1024 * 1024


def _pick_block(target: int, padded_full: int) -> int:
    """Largest multiple of 128 <= target that divides padded_full (avoids
    over-padding N/K); falls back to min(target, padded_full)."""
    if target >= padded_full:
        return padded_full
    cand = (target // 128) * 128
    while cand >= 128:
        if padded_full % cand == 0:
            return cand
        cand -= 128
    return min(target, padded_full)


def _linear_config(K: int, N: int, itemsize: int, max_tm: int):
    """Generation-aware tile / VMEM-limit selection."""
    vmem_cap = _vmem_capacity_bytes()
    if vmem_cap >= 96 * 1024 * 1024:
        # v5e / v6e: 128 MiB VMEM -> big resident panels.
        tn_t, tk_t = 1024, 2048
        vmem_limit = 100 * 1024 * 1024
    else:
        # v7x: 64 MiB per TensorCore -> bounded tile set.
        tn_t, tk_t = 512, 1024
        vmem_limit = 48 * 1024 * 1024

    np128 = _round_up(N, 128)
    kp128 = _round_up(K, 128)
    tn = _pick_block(tn_t, np128)
    tk = _pick_block(tk_t, kp128)

    def working_set(tm, tn_, tk_):
        # 2x x-buf, 3x weight-buf (Buffered(3)), 2x bias, 2x out, fp32 acc.
        return (itemsize * (2 * tm * tk_ + 3 * tk_ * tn_ + 2 * tn_ + 2 * tm * tn_)
                + 4 * tm * tn_)

    budget = int(vmem_limit * 0.8)
    while working_set(max_tm, tn, tk) > budget and tk > 128:
        tk = max(128, tk // 2)
    while working_set(max_tm, tn, tk) > budget and tn > 128:
        tn = max(128, tn // 2)

    Np = _round_up(np128, tn)
    Kp = _round_up(kp128, tk)
    return tn, tk, Np, Kp, vmem_limit


def _linear_kernel(x_ref, w_ref, b_ref, o_ref, acc_ref):
    # x_ref: (tm, tk), w_ref: (tk, tn) pre-transposed, b_ref: (1, tn) fp32,
    # o_ref: (tm, tn), acc_ref: fp32 (tm, tn) scratch persistent over K steps.
    k = pl.program_id(2)

    @pl.when(k == 0)
    def _init():
        # Fold bias into the accumulator init -> epilogue is a pure cast+store.
        acc_ref[...] = jnp.broadcast_to(b_ref[...], acc_ref.shape).astype(jnp.float32)

    acc_ref[...] += jnp.dot(
        x_ref[...], w_ref[...], preferred_element_type=jnp.float32
    )

    @pl.when(k == pl.num_programs(2) - 1)
    def _finalize():
        o_ref[...] = acc_ref[...].astype(o_ref.dtype)


def make_fully_connected(weight, bias, *, use_bf16_inputs=False, max_tm=256):
    """Prepare nn.Linear parameters once; return a callable x -> x @ W.T + b."""
    N, K = weight.shape
    assert bias.shape == (N,)
    in_dtype = jnp.bfloat16 if use_bf16_inputs else weight.dtype
    itemsize = jnp.dtype(in_dtype).itemsize

    tn, tk, Np, Kp, vmem_limit = _linear_config(K, N, itemsize, max_tm)

    # ---- one-time parameter layout work (hoisted out of the hot path) ----
    w_kn = jnp.pad(weight.T, ((0, Kp - K), (0, Np - N))).astype(in_dtype)
    b_row = jnp.pad(bias, (0, Np - N)).astype(jnp.float32).reshape(1, Np)
    w_kn = jax.block_until_ready(w_kn)
    b_row = jax.block_until_ready(b_row)

    n_k_steps = Kp // tk
    if n_k_steps >= 3:
        # Memory-bound regime: 3-deep buffering on the streamed weight panel.
        weight_spec = pl.BlockSpec((tk, tn), lambda i, j, k: (k, j),
                                   pipeline_mode=pl.Buffered(3))
    else:
        weight_spec = pl.BlockSpec((tk, tn), lambda i, j, k: (k, j))

    @jax.jit
    def _forward(x, w_p, b_p):
        B, Kx = x.shape
        out_dtype = x.dtype
        tm = min(max_tm, _round_up(B, 8))
        Mp = _round_up(B, tm)

        x_p = x.astype(in_dtype)
        if Mp != B or Kp != Kx:
            x_p = jnp.pad(x_p, ((0, Mp - B), (0, Kp - Kx)))

        grid = (Mp // tm, Np // tn, Kp // tk)

        # Actual tiled traffic: x re-read per N tile, W re-read per M tile.
        bytes_accessed = (itemsize * (Np // tn) * Mp * Kp
                          + itemsize * (Mp // tm) * Kp * Np
                          + 4 * Mp * Np + 4 * Np)
        cost = pl.CostEstimate(flops=2 * B * Kx * N, transcendentals=0,
                               bytes_accessed=bytes_accessed)

        out_p = pl.pallas_call(
            _linear_kernel,
            out_shape=jax.ShapeDtypeStruct((Mp, Np), out_dtype),
            grid_spec=pltpu.PrefetchScalarGridSpec(
                num_scalar_prefetch=0,
                grid=grid,
                in_specs=[
                    pl.BlockSpec((tm, tk), lambda i, j, k: (i, k)),   # x tile
                    weight_spec,                                      # W.T tile
                    pl.BlockSpec((1, tn), lambda i, j, k: (0, j)),    # bias tile
                ],
                out_specs=pl.BlockSpec((tm, tn), lambda i, j, k: (i, j)),
                scratch_shapes=[pltpu.VMEM((tm, tn), jnp.float32)],
            ),
            compiler_params=pltpu.CompilerParams(
                dimension_semantics=("parallel", "parallel", "arbitrary"),
                vmem_limit_bytes=vmem_limit,
            ),
            cost_estimate=cost,
        )(x_p, w_p, b_p)

        return out_p[:B, :N]

    def forward(x):
        assert x.shape[-1] == K, "input_dim mismatch"
        return _forward(x, w_kn, b_row)

    return forward


def fully_connected(x, weight, bias, **kwargs):
    """Convenience one-shot wrapper (prep + call); prefer make_fully_connected
    when the same weights are reused across calls."""
    return make_fully_connected(weight, bias, **kwargs)(x)


if __name__ == "__main__":
    # Small shapes consistent with the module: input_dim=32, output_dim=16, batch=8.
    batch, input_dim, output_dim = 8, 32, 16

    key = jax.random.PRNGKey(0)
    kx, kw, kb = jax.random.split(key, 3)

    x = jax.random.normal(kx, (batch, input_dim), dtype=jnp.float32)
    # Deterministic init mimicking nn.Linear's uniform(-1/sqrt(K), 1/sqrt(K)).
    bound = 1.0 / (input_dim ** 0.5)
    weight = jax.random.uniform(
        kw, (output_dim, input_dim), minval=-bound, maxval=bound, dtype=jnp.float32
    )
    bias = jax.random.uniform(
        kb, (output_dim,), minval=-bound, maxval=bound, dtype=jnp.float32
    )

    # Parameter layout work happens ONCE here; the returned closure is the
    # per-call hot path (pad x + pallas_call only).
    fc = make_fully_connected(weight, bias)

    out = jax.block_until_ready(fc(x))

    # Correctness check against plain JAX reference.
    ref = x @ weight.T + bias
    assert out.shape == (batch, output_dim)
    assert jnp.allclose(out, ref, atol=1e-5, rtol=1e-5)

    print("KERNEL_OK")
</pallas_src>

<mosaic_0001>
module attributes {stable_mosaic.version = 11 : i64} {
  func.func @_linear_kernel(%arg0: i32, %arg1: i32, %arg2: i32, %arg3: memref<8x128xf32, #tpu.memory_space<vmem>>, %arg4: memref<128x128xf32, #tpu.memory_space<vmem>>, %arg5: memref<1x128xf32, #tpu.memory_space<vmem>>, %arg6: memref<8x128xf32, #tpu.memory_space<vmem>>, %arg7: memref<8x128xf32, #tpu.memory_space<vmem>>) attributes {dimension_semantics = [#tpu.dimension_semantics<parallel>, #tpu.dimension_semantics<parallel>, #tpu.dimension_semantics<arbitrary>], iteration_bounds = array<i64: 1, 1, 1>, scalar_prefetch = 0 : i64, scratch_operands = 1 : i64, tpu.core_type = #tpu.core_type<tc>, window_params = [{transform_indices = @transform_0, window_bounds = array<i64: 8, 128>}, {transform_indices = @transform_1, window_bounds = array<i64: 128, 128>}, {transform_indices = @transform_2, window_bounds = array<i64: 1, 128>}, {transform_indices = @transform_3, window_bounds = array<i64: 8, 128>}]} {
    %c0_i32 = arith.constant 0 : i32
    %0 = arith.cmpi eq, %arg2, %c0_i32 : i32
    %1 = arith.extui %0 : i1 to i32
    %c0_i32_0 = arith.constant 0 : i32
    %2 = arith.cmpi ne, %1, %c0_i32_0 : i32
    scf.if %2 {
      %c0_10 = arith.constant 0 : index
      %c0_11 = arith.constant 0 : index
      %12 = vector.load %arg5[%c0_10, %c0_11] : memref<1x128xf32, #tpu.memory_space<vmem>>, vector<1x128xf32>
      %13 = vector.shape_cast %12 : vector<1x128xf32> to vector<1x128xf32>
      %14 = vector.broadcast %13 : vector<1x128xf32> to vector<8x128xf32>
      %c0_12 = arith.constant 0 : index
      %c0_13 = arith.constant 0 : index
      %15 = vector.load %arg7[%c0_12, %c0_13] : memref<8x128xf32, #tpu.memory_space<vmem>>, vector<8x128xf32>
      tpu.vector_store %arg7[%c0_12, %c0_13], %14 {strides = array<i32>} : memref<8x128xf32, #tpu.memory_space<vmem>>, vector<8x128xf32>,
    } else {
    }
    %c0 = arith.constant 0 : index
    %c0_1 = arith.constant 0 : index
    %3 = vector.load %arg7[%c0, %c0_1] : memref<8x128xf32, #tpu.memory_space<vmem>>, vector<8x128xf32>
    %c0_2 = arith.constant 0 : index
    %c0_3 = arith.constant 0 : index
    %4 = vector.load %arg3[%c0_2, %c0_3] : memref<8x128xf32, #tpu.memory_space<vmem>>, vector<8x128xf32>
    %c0_4 = arith.constant 0 : index
    %c0_5 = arith.constant 0 : index
    %5 = vector.load %arg4[%c0_4, %c0_5] : memref<128x128xf32, #tpu.memory_space<vmem>>, vector<128x128xf32>
    %cst = arith.constant dense<0.000000e+00> : vector<8x128xf32>
    %6 = tpu.matmul %4, %5, %cst {dimension_numbers = #tpu.dot_dimension_numbers<[1], [0], [0], [1], [0, 0, 1, 1], [], []>} : vector<8x128xf32>, vector<128x128xf32>, vector<8x128xf32> -> vector<8x128xf32>
    %7 = arith.addf %3, %6 : vector<8x128xf32>
    %c0_6 = arith.constant 0 : index
    %c0_7 = arith.constant 0 : index
    %8 = vector.load %arg7[%c0_6, %c0_7] : memref<8x128xf32, #tpu.memory_space<vmem>>, vector<8x128xf32>
    tpu.vector_store %arg7[%c0_6, %c0_7], %7 {strides = array<i32>} : memref<8x128xf32, #tpu.memory_space<vmem>>, vector<8x128xf32>,
    %c0_i32_8 = arith.constant 0 : i32
    %9 = arith.cmpi eq, %arg2, %c0_i32_8 : i32
    %10 = arith.extui %9 : i1 to i32
    %c0_i32_9 = arith.constant 0 : i32
    %11 = arith.cmpi ne, %10, %c0_i32_9 : i32
    scf.if %11 {
      %c0_10 = arith.constant 0 : index
      %c0_11 = arith.constant 0 : index
      %12 = vector.load %arg7[%c0_10, %c0_11] : memref<8x128xf32, #tpu.memory_space<vmem>>, vector<8x128xf32>
      %c0_12 = arith.constant 0 : index
      %c0_13 = arith.constant 0 : index
      %13 = vector.load %arg6[%c0_12, %c0_13] : memref<8x128xf32, #tpu.memory_space<vmem>>, vector<8x128xf32>
      tpu.vector_store %arg6[%c0_12, %c0_13], %12 {strides = array<i32>} : memref<8x128xf32, #tpu.memory_space<vmem>>, vector<8x128xf32>,
    } else {
    }
    return
  }
  func.func @transform_0(%arg0: i32, %arg1: i32, %arg2: i32) -> (i32, i32) {
    %c0_i32 = arith.constant 0 : i32
    return %arg0, %arg2 : i32, i32
  }
  func.func @transform_1(%arg0: i32, %arg1: i32, %arg2: i32) -> (i32, i32) {
    %c0_i32 = arith.constant 0 : i32
    return %arg2, %arg1 : i32, i32
  }
  func.func @transform_2(%arg0: i32, %arg1: i32, %arg2: i32) -> (i32, i32) {
    %c0_i32 = arith.constant 0 : i32
    %c0_i32_0 = arith.constant 0 : i32
    return %c0_i32, %arg1 : i32, i32
  }
  func.func @transform_3(%arg0: i32, %arg1: i32, %arg2: i32) -> (i32, i32) {
    %c0_i32 = arith.constant 0 : i32
    return %arg0, %arg1 : i32, i32
  }
}

</mosaic_0001>

<llo_original>
// kernel: _forward.1
$region0: #{_forward.1}
  #allocation0 [shape = 'u32[]', space=smem, size = 0x4, offset = 0x4, fixed_abs, tag = 'smem constant byte address 0x4 - core index']
  #allocation1 [shape = 'u32[144,128]{1,0:T(1,128)}', space=vmem, size = 0x12000, scoped, tag = 'internal scratch']
  #allocation2 [shape = 'f32[8,128]{1,0:T(8,128)}', space=vmem, size = 0x1000, scoped, tag = 'scratch operand']
  %s0 = inlined_call_operand.vmem [shape: f32[8,128], index: 0, kind: input, shape index: {}]
  %s1 = inlined_call_operand.hbm [shape: f32[128,128], index: 1, kind: input, shape index: {}]
  %s2 = inlined_call_operand.vmem [shape: f32[1,128], index: 2, kind: input, shape index: {}]
  %s3 = inlined_call_operand.hbm [shape: f32[8,128], index: 3, kind: output, shape index: {}]
  %s4 = sld [smem:[#allocation0]]
  $region34: #{_forward.1} parent=0
    _
  %s6 = ssub.s32 1, %s4
  %s7 = scalar_select 0, %s6, %s4
  $region1: #{_forward.1} parent=0
    #allocation3 [shape = 'u8[65536]{0}', space=vmem, size = 0x10000, scoped, tag = 'input window, operand 1, single buffered']
    #allocation4 [shape = 's32[1]{0}', space=sflag, size = 0x4, scoped, tag = 'scoped memory for _forward.1']
    #allocation5 [shape = 's32[1]{0}', space=sflag, size = 0x4, scoped, tag = 'scoped memory for _forward.1']
    #allocation6 [shape = 'u8[4096]{0}', space=vmem, size = 0x1000, scoped, tag = 'output window, operand 0, single buffered']
    %8 = vsyncpa [#allocation4], 0
    %9 = vsyncpa [#allocation5], 0
    // Predicated region
    $region2: #{_forward.1} parent=1 // pred_check
      _
    $region3: #{_forward.1} parent=1 // pred_check_branch
      %11 = sbr.rel (0) target = $region5
    $region4: #{_forward.1} parent=1 // pred_region
      _
    $region5: #{_forward.1} parent=1 // pred_fallthru
      _
    // Predicated region
    $region6: #{_forward.1} parent=1 // pred_check
      _
    $region7: #{_forward.1} parent=1 // pred_check_branch
      %13 = sbr.rel (0) target = $region9
    $region8: #{_forward.1} parent=1 // pred_region
      %s15 = ssub.s32 2048, 2048
      %16 = vsyncadd [#allocation4], %s15
      %s17 = sshll.u32 [#allocation3], 4
      %s18 = int_to_ptr.vmem [resolvable:$true] %s17
      %23 = dma.hbm_to_vmem [thread:$0]  %s1, 2048, %s18, [#allocation4], 128, 128, 8
    $region9: #{_forward.1} parent=1 // pred_fallthru
      _
    // Predicated region
    $region10: #{_forward.1} parent=1 // pred_check
      _
    $region11: #{_forward.1} parent=1 // pred_check_branch
      %25 = sbr.rel (0) target = $region13
    $region12: #{_forward.1} parent=1 // pred_region
      _
    $region13: #{_forward.1} parent=1 // pred_fallthru
      _
    // Predicated region
    $region14: #{_forward.1} parent=1 // pred_check
      _
    $region15: #{_forward.1} parent=1 // pred_check_branch
      %27 = sbr.rel (0) target = $region17
    $region16: #{_forward.1} parent=1 // pred_region
      %28 = dma.done [#allocation4], 2048
    $region17: #{_forward.1} parent=1 // pred_fallthru
      _
    %p29 = scmp.eq.s32.totalorder 0, 0
    // Predicated region
    $region18: #{_forward.1} parent=1 // pred_check
      %p30 = pneg %p29
    $region19: #{_forward.1} parent=1 // pred_check_branch
      %32 = sbr.rel (%p30) target = $region21
    $region20: #{_forward.1} parent=1 // pred_region
      %v33 = vld [vmem:[%s2] sm:$0x1]
      %v35 = vlaneseq
      %v36 = vshrl.u32 %v35, 7
      %v37 = vsub.s32 0, %v36
      %v38 = vrot.slane %v33, %v37
      %40 = vst [vmem:[#allocation2] sm:$0xff] %v38
    $region21: #{_forward.1} parent=1 // pred_fallthru
      _
    %v41 = vld [vmem:[#allocation2] sm:$0xff]
    %v42 = vld [vmem:[%s0] sm:$0xff]
    %v43 = vld [vmem:[#allocation3] sm:$0xff]
    %v44 = vld [vmem:[#allocation3 + $0x8] sm:$0xff]
    %v45 = vld [vmem:[#allocation3 + $0x10] sm:$0xff]
    %v46 = vld [vmem:[#allocation3 + $0x18] sm:$0xff]
    %v47 = vld [vmem:[#allocation3 + $0x20] sm:$0xff]
    %v48 = vld [vmem:[#allocation3 + $0x28] sm:$0xff]
    %v49 = vld [vmem:[#allocation3 + $0x30] sm:$0xff]
    %v50 = vld [vmem:[#allocation3 + $0x38] sm:$0xff]
    %v51 = vld [vmem:[#allocation3 + $0x40] sm:$0xff]
    %v52 = vld [vmem:[#allocation3 + $0x48] sm:$0xff]
    %v53 = vld [vmem:[#allocation3 + $0x50] sm:$0xff]
    %v54 = vld [vmem:[#allocation3 + $0x58] sm:$0xff]
    %v55 = vld [vmem:[#allocation3 + $0x60] sm:$0xff]
    %v56 = vld [vmem:[#allocation3 + $0x68] sm:$0xff]
    %v57 = vld [vmem:[#allocation3 + $0x70] sm:$0xff]
    %v58 = vld [vmem:[#allocation3 + $0x78] sm:$0xff]
    %59 = vmatprep.subr.mxu0 0.0
    %60 = vmatpush1.msra.mxu0 %v43
    %61 = vmatprep.subr.mxu0 0.0
    %62 = vmatpush1.msra.mxu0 %v44
    %63 = vmatprep.subr.mxu0 0.0
    %64 = vmatpush1.msra.mxu0 %v45
    %65 = vmatprep.subr.mxu0 0.0
    %66 = vmatpush1.msra.mxu0 %v46
    %67 = vmatprep.subr.mxu0 0.0
    %68 = vmatpush1.msra.mxu0 %v47
    %69 = vmatprep.subr.mxu0 0.0
    %70 = vmatpush1.msra.mxu0 %v48
    %71 = vmatprep.subr.mxu0 0.0
    %72 = vmatpush1.msra.mxu0 %v49
    %73 = vmatprep.subr.mxu0 0.0
    %74 = vmatpush1.msra.mxu0 %v50
    %75 = vmatprep.subr.mxu0 0.0
    %76 = vmatpush1.msra.mxu0 %v51
    %77 = vmatprep.subr.mxu0 0.0
    %78 = vmatpush1.msra.mxu0 %v52
    %79 = vmatprep.subr.mxu0 0.0
    %80 = vmatpush1.msra.mxu0 %v53
    %81 = vmatprep.subr.mxu0 0.0
    %82 = vmatpush1.msra.mxu0 %v54
    %83 = vmatprep.subr.mxu0 0.0
    %84 = vmatpush1.msra.mxu0 %v55
    %85 = vmatprep.subr.mxu0 0.0
    %86 = vmatpush1.msra.mxu0 %v56
    %87 = vmatprep.subr.mxu0 0.0
    %88 = vmatpush1.msra.mxu0 %v57
    %89 = vmatprep.subr.mxu0 0.0
    %90 = vmatpush1.msra.mxu0 %v58
    %91 = vmatprep.subr.mxu0 0.0
    %92 = vmatpush1.msra.mxu0 0.0
    %93 = vmatprep.subr.mxu0 0.0
    %94 = vmatpush1.msra.mxu0 0.0
    %95 = vmatprep.subr.mxu0 0.0
    %96 = vmatpush1.msra.mxu0 0.0
    %97 = vmatprep.subr.mxu0 0.0
    %98 = vmatpush1.msra.mxu0 0.0
    %99 = vmatprep.subr.mxu0 0.0
    %100 = vmatpush1.msra.mxu0 0.0
    %101 = vmatprep.subr.mxu0 0.0
    %102 = vmatpush1.msra.mxu0 0.0
    %103 = vmatprep.subr.mxu0 0.0
    %104 = vmatpush1.msra.mxu0 0.0
    %105 = vmatprep.subr.mxu0 0.0
    %106 = vmatpush1.msra.mxu0 0.0
    %107 = vmatprep.subr.mxu0 0.0
    %108 = vmatpush1.msra.mxu0 0.0
    %109 = vmatprep.subr.mxu0 0.0
    %110 = vmatpush1.msra.mxu0 0.0
    %111 = vmatprep.subr.mxu0 0.0
    %112 = vmatpush1.msra.mxu0 0.0
    %113 = vmatprep.subr.mxu0 0.0
    %114 = vmatpush1.msra.mxu0 0.0
    %115 = vmatprep.subr.mxu0 0.0
    %116 = vmatpush1.msra.mxu0 0.0
    %117 = vmatprep.subr.mxu0 0.0
    %118 = vmatpush1.msra.mxu0 0.0
    %119 = vmatprep.subr.mxu0 0.0
    %120 = vmatpush1.msra.mxu0 0.0
    %121 = vmatprep.subr.mxu0 0.0
    %122 = vmatpush1.msra.mxu0 0.0
    %123 = vmatprep.mubr.f32.mxu0 0.0
    %124 = vmatmul.mubr.f32.gmra.mrb[0].mxu0 %v42
    %v125 = vpop.f32.mrb[0].mxu0
    %v126 = vadd.f32 0.0, %v125
    %v127 = vpop.f32.mrb[0].mxu0
    %128 = vdwg.mxu0
    %v129 = vadd.f32 %v41, %v126
    %130 = vst [vmem:[#allocation2] sm:$0xff] %v129
    // Predicated region
    $region22: #{_forward.1} parent=1 // pred_check
      %p131 = pneg %p29
    $region23: #{_forward.1} parent=1 // pred_check_branch
      %133 = sbr.rel (%p131) target = $region25
    $region24: #{_forward.1} parent=1 // pred_region
      %v134 = vld [vmem:[#allocation2] sm:$0xff]
      %135 = vst [vmem:[#allocation6] sm:$0xff] %v134
    $region25: #{_forward.1} parent=1 // pred_fallthru
      _
    // Predicated region
    $region26: #{_forward.1} parent=1 // pred_check
      _
    $region27: #{_forward.1} parent=1 // pred_check_branch
      %137 = sbr.rel (0) target = $region29
    $region28: #{_forward.1} parent=1 // pred_region
      %s139 = ssub.s32 128, 128
      %140 = vsyncadd [#allocation5], %s139
      %s142 = sshll.u32 [#allocation6], 4
      %s143 = int_to_ptr.vmem [resolvable:$true] %s142
      %145 = dma.vmem_to_hbm [thread:$0]  %s143, 128, %s3, [#allocation5]
    $region29: #{_forward.1} parent=1 // pred_fallthru
      _
    // Predicated region
    $region30: #{_forward.1} parent=1 // pred_check
      _
    $region31: #{_forward.1} parent=1 // pred_check_branch
      %147 = sbr.rel (0) target = $region33
    $region32: #{_forward.1} parent=1 // pred_region
      %148 = dma.done [#allocation5], 128
    $region33: #{_forward.1} parent=1 // pred_fallthru
      _
    %149 = vsyncpa [#allocation4], 1
    %150 = vsyncpa [#allocation5], 1

</llo_original>
